<compile_context>
chip_gen: v7x
topology: tpu7x:2x2x1
jax: 0.10.0
libtpu: 0.0.40
codegen_flags: <defaults>
</compile_context>

<pallas_src>
import functools

import jax
import jax.numpy as jnp
from jax.experimental import pallas as pl
from jax.experimental.pallas import tpu as pltpu

_LANE = 128
_VMEM_TILE_BUDGET = 20 * 1024 * 1024   # per-step working set target (fits every gen)
_VMEM_LIMIT = 32 * 1024 * 1024         # <= default scoped limit v6e/v7x, well under v7x 64 MiB


def _round_up(x, m):
    return ((x + m - 1) // m) * m


# ----------------------------------------------------------------------------
# Fused kernel: variational mask + GEMM + bias in one pass over W / log_sigma.
#   keep  <=>  clamp(2*log_sigma - 2*log(1e-16+|W|), -10, 10) < 3
#         <=>  log_sigma - log(1e-16 + |W|) < 1.5
# ----------------------------------------------------------------------------
def _fused_linear_kernel(x_ref, w_ref, ls_ref, b_ref, o_ref, acc_ref, *, mxu_dtype):
    @pl.when(pl.program_id(2) == 0)
    def _():
        acc_ref[...] = jnp.zeros_like(acc_ref)

    w = w_ref[...]                                               # f32 (tn, tk)
    keep = (ls_ref[...] - jnp.log(1e-16 + jnp.abs(w))) < 1.5
    w_eff = jnp.where(keep, w, 0.0).astype(mxu_dtype)
    x = x_ref[...].astype(mxu_dtype)                             # in-register cast, free under MXU

    acc_ref[...] += jax.lax.dot_general(
        x, w_eff,
        dimension_numbers=(((1,), (1,)), ((), ())),              # contract dim 1 of both (no transpose)
        preferred_element_type=jnp.float32,
    )

    @pl.when(pl.program_id(2) == pl.num_programs(2) - 1)
    def _():
        o_ref[...] = (acc_ref[...] + b_ref[...]).astype(o_ref.dtype)


# ----------------------------------------------------------------------------
# Two-pass path (large batch only): materialize the masked weight once (in the
# MXU dtype), then a plain GEMM so W isn't re-streamed in f32 per batch tile.
# ----------------------------------------------------------------------------
def _masked_weight_kernel(w_ref, ls_ref, o_ref):
    w = w_ref[...]
    keep = (ls_ref[...] - jnp.log(1e-16 + jnp.abs(w))) < 1.5
    o_ref[...] = jnp.where(keep, w, 0.0).astype(o_ref.dtype)


def _linear_bias_kernel(x_ref, w_ref, b_ref, o_ref, acc_ref, *, mxu_dtype):
    @pl.when(pl.program_id(2) == 0)
    def _():
        acc_ref[...] = jnp.zeros_like(acc_ref)

    acc_ref[...] += jax.lax.dot_general(
        x_ref[...].astype(mxu_dtype), w_ref[...],
        dimension_numbers=(((1,), (1,)), ((), ())),
        preferred_element_type=jnp.float32,
    )

    @pl.when(pl.program_id(2) == pl.num_programs(2) - 1)
    def _():
        o_ref[...] = (acc_ref[...] + b_ref[...]).astype(o_ref.dtype)


def _tile_plan(B, in_f, out_f):
    # ---- M (batch) ----
    if B <= 512:
        tm, b_pad = B, B                     # single full-extent M block, no pad / slice
    else:
        tm = 256                             # fills 256x256 MXU rows on v6e/v7x
        b_pad = _round_up(B, tm)

    # ---- N (output features) ----
    if out_f % _LANE == 0:
        out_pad = out_f
        tn = 256 if (out_f % 256 == 0 and out_f >= 512) else _LANE
    elif out_f <= 1024:
        out_pad, tn = out_f, out_f           # ragged but small: one full-extent block, no pad
    else:
        out_pad = _round_up(out_f, _LANE)
        tn = 256 if out_pad % 256 == 0 else _LANE

    # ---- K (input features): as large as the per-step VMEM budget allows ----
    def footprint(tk):                       # fused path, double-buffered in/out + acc
        return 2 * 4 * (tm * tk + 2 * tn * tk + tn) + 3 * 4 * tm * tn

    if footprint(in_f) <= _VMEM_TILE_BUDGET:
        tk, in_pad = in_f, in_f              # no K grid axis / no accumulator loop at all
    else:
        in_pad = _round_up(in_f, 512)
        tk = 512
        for cand in (2048, 1024):
            if in_pad % cand == 0 and footprint(cand) <= _VMEM_TILE_BUDGET:
                tk = cand
                break

    return tm, tn, tk, b_pad, out_pad, in_pad


@functools.partial(jax.jit, static_argnames=("mxu_dtype", "fuse"))
def linear_svd_forward(x, W, log_sigma, bias, *, mxu_dtype=jnp.bfloat16, fuse=None):
    """Eval-mode LinearSVD forward.

    x: (B, in_f) f32; W, log_sigma: (out_f, in_f) f32; bias: (1, out_f) f32.
    Returns (B, out_f) f32.
    """
    B, in_f = x.shape
    out_f = W.shape[0]

    tm, tn, tk, b_pad, out_pad, in_pad = _tile_plan(B, in_f, out_f)
    m_blocks, n_blocks, k_blocks = b_pad // tm, out_pad // tn, in_pad // tk
    if fuse is None:
        # single batch tile -> W/log_sigma streamed exactly once: fusion is optimal.
        fuse = m_blocks == 1

    x = x.astype(jnp.float32)
    W = W.astype(jnp.float32)
    log_sigma = log_sigma.astype(jnp.float32)
    bias = bias.reshape(1, out_f).astype(jnp.float32)

    # Pad only when strictly required (aligned / full-extent shapes are zero-copy).
    if (b_pad, in_pad) != (B, in_f):
        x = jnp.zeros((b_pad, in_pad), jnp.float32).at[:B, :in_f].set(x)
    if (out_pad, in_pad) != (out_f, in_f):
        W = jnp.zeros((out_pad, in_pad), jnp.float32).at[:out_f, :in_f].set(W)
        log_sigma = jnp.zeros((out_pad, in_pad), jnp.float32).at[:out_f, :in_f].set(log_sigma)
    if out_pad != out_f:
        bias = jnp.zeros((1, out_pad), jnp.float32).at[:, :out_f].set(bias)

    grid = (m_blocks, n_blocks, k_blocks)
    compiler_params = pltpu.CompilerParams(
        dimension_semantics=("parallel", "parallel", "arbitrary"),
        vmem_limit_bytes=_VMEM_LIMIT,
    )
    out_shape = jax.ShapeDtypeStruct((b_pad, out_pad), jnp.float32)
    x_spec = pl.BlockSpec((tm, tk), lambda i, j, k: (i, k))
    w_spec = pl.BlockSpec((tn, tk), lambda i, j, k: (j, k))
    b_spec = pl.BlockSpec((1, tn), lambda i, j, k: (0, j))
    out_spec = pl.BlockSpec((tm, tn), lambda i, j, k: (i, j))
    acc = pltpu.VMEM((tm, tn), jnp.float32)

    if fuse:
        y = pl.pallas_call(
            functools.partial(_fused_linear_kernel, mxu_dtype=mxu_dtype),
            out_shape=out_shape,
            grid_spec=pltpu.PrefetchScalarGridSpec(
                num_scalar_prefetch=0, grid=grid,
                in_specs=[x_spec, w_spec, w_spec, b_spec],
                out_specs=out_spec,
                scratch_shapes=[acc]),
            compiler_params=compiler_params,
        )(x, W, log_sigma, bias)
    else:
        # Pass 1: masked weight, streamed once, stored in the MXU dtype.
        w_eff = pl.pallas_call(
            _masked_weight_kernel,
            out_shape=jax.ShapeDtypeStruct((out_pad, in_pad), mxu_dtype),
            grid=(n_blocks, k_blocks),
            in_specs=[pl.BlockSpec((tn, tk), lambda j, k: (j, k)),
                      pl.BlockSpec((tn, tk), lambda j, k: (j, k))],
            out_specs=pl.BlockSpec((tn, tk), lambda j, k: (j, k)),
            compiler_params=pltpu.CompilerParams(
                dimension_semantics=("parallel", "parallel"),
                vmem_limit_bytes=_VMEM_LIMIT),
        )(W, log_sigma)
        # Pass 2: tiled GEMM + bias.
        y = pl.pallas_call(
            functools.partial(_linear_bias_kernel, mxu_dtype=mxu_dtype),
            out_shape=out_shape,
            grid_spec=pltpu.PrefetchScalarGridSpec(
                num_scalar_prefetch=0, grid=grid,
                in_specs=[x_spec, w_spec, b_spec],
                out_specs=out_spec,
                scratch_shapes=[acc]),
            compiler_params=compiler_params,
        )(x, w_eff, bias)

    if (b_pad, out_pad) != (B, out_f):
        y = y[:B, :out_f]
    return y


def linear_svd_reference(x, W, log_sigma, bias):
    log_alpha = log_sigma * 2.0 - 2.0 * jnp.log(1e-16 + jnp.abs(W))
    log_alpha = jnp.clip(log_alpha, -10.0, 10.0)
    w_eff = W * (log_alpha < 3.0).astype(W.dtype)
    return x @ w_eff.T + bias


if __name__ == "__main__":
    key = jax.random.PRNGKey(0)
    kx, kw, kx2, kw2, ks2 = jax.random.split(key, 5)

    # --- Test A/B: small shape, matches module defaults; out=64 exercises the
    # no-pad full-extent output path. Init mirrors reset_parameters().
    B, in_features, out_features = 8, 128, 64
    x = jax.random.normal(kx, (B, in_features), dtype=jnp.float32)
    W = 0.02 * jax.random.normal(kw, (out_features, in_features), dtype=jnp.float32)
    log_sigma = jnp.full((out_features, in_features), -5.0, dtype=jnp.float32)
    bias = jnp.zeros((1, out_features), dtype=jnp.float32)
    y_ref = linear_svd_reference(x, W, log_sigma, bias)

    # A: default path (fused mask+GEMM, bf16 MXU operands, f32 accumulation)
    y_bf16 = jax.block_until_ready(linear_svd_forward(x, W, log_sigma, bias))
    assert y_bf16.shape == (B, out_features)
    assert jnp.allclose(y_bf16, y_ref, atol=5e-2, rtol=5e-2)

    # B: f32 MXU path for a tight-tolerance check
    y_f32 = jax.block_until_ready(
        linear_svd_forward(x, W, log_sigma, bias, mxu_dtype=jnp.float32))
    assert jnp.allclose(y_f32, y_ref, atol=1e-5, rtol=1e-5)

    # --- Test C: two-pass (masked-weight kernel + GEMM) path, multi N blocks.
    B2, in2, out2 = 16, 256, 256
    x2 = jax.random.normal(kx2, (B2, in2), dtype=jnp.float32)
    W2 = 0.02 * jax.random.normal(kw2, (out2, in2), dtype=jnp.float32)
    ls2 = -5.0 + 0.1 * jax.random.normal(ks2, (out2, in2), dtype=jnp.float32)
    b2 = jnp.zeros((1, out2), dtype=jnp.float32)
    y2_ref = linear_svd_reference(x2, W2, ls2, b2)
    y2 = jax.block_until_ready(linear_svd_forward(x2, W2, ls2, b2, fuse=False))
    assert y2.shape == (B2, out2)
    assert jnp.allclose(y2, y2_ref, atol=5e-2, rtol=5e-2)

    print("KERNEL_OK")
</pallas_src>

<mosaic_0001>
module attributes {stable_mosaic.version = 11 : i64} {
  func.func @_fused_linear_kernel(%arg0: i32, %arg1: i32, %arg2: i32, %arg3: memref<8x128xf32, #tpu.memory_space<vmem>>, %arg4: memref<64x128xf32, #tpu.memory_space<vmem>>, %arg5: memref<64x128xf32, #tpu.memory_space<vmem>>, %arg6: memref<1x64xf32, #tpu.memory_space<vmem>>, %arg7: memref<8x64xf32, #tpu.memory_space<vmem>>, %arg8: memref<8x64xf32, #tpu.memory_space<vmem>>) attributes {dimension_semantics = [#tpu.dimension_semantics<parallel>, #tpu.dimension_semantics<parallel>, #tpu.dimension_semantics<arbitrary>], iteration_bounds = array<i64: 1, 1, 1>, scalar_prefetch = 0 : i64, scratch_operands = 1 : i64, tpu.core_type = #tpu.core_type<tc>, window_params = [{transform_indices = @transform_0, window_bounds = array<i64: 8, 128>}, {transform_indices = @transform_1, window_bounds = array<i64: 64, 128>}, {transform_indices = @transform_2, window_bounds = array<i64: 64, 128>}, {transform_indices = @transform_3, window_bounds = array<i64: 1, 64>}, {transform_indices = @transform_4, window_bounds = array<i64: 8, 64>}]} {
    %c0_i32 = arith.constant 0 : i32
    %0 = arith.cmpi eq, %arg2, %c0_i32 : i32
    %1 = arith.extui %0 : i1 to i32
    %c0_i32_0 = arith.constant 0 : i32
    %2 = arith.cmpi ne, %1, %c0_i32_0 : i32
    scf.if %2 {
      %cst_15 = arith.constant 0.000000e+00 : f32
      %24 = vector.broadcast %cst_15 : f32 to vector<8x64xf32>
      %c0_16 = arith.constant 0 : index
      %c0_17 = arith.constant 0 : index
      %25 = vector.load %arg8[%c0_16, %c0_17] : memref<8x64xf32, #tpu.memory_space<vmem>>, vector<8x64xf32>
      tpu.vector_store %arg8[%c0_16, %c0_17], %24 {strides = array<i32>} : memref<8x64xf32, #tpu.memory_space<vmem>>, vector<8x64xf32>,
    } else {
    }
    %c0 = arith.constant 0 : index
    %c0_1 = arith.constant 0 : index
    %3 = vector.load %arg4[%c0, %c0_1] : memref<64x128xf32, #tpu.memory_space<vmem>>, vector<64x128xf32>
    %c0_2 = arith.constant 0 : index
    %c0_3 = arith.constant 0 : index
    %4 = vector.load %arg5[%c0_2, %c0_3] : memref<64x128xf32, #tpu.memory_space<vmem>>, vector<64x128xf32>
    %5 = math.absf %3 : vector<64x128xf32>
    %cst = arith.constant 1.000000e-16 : f32
    %6 = vector.broadcast %cst : f32 to vector<64x128xf32>
    %7 = arith.addf %6, %5 : vector<64x128xf32>
    %8 = math.log %7 : vector<64x128xf32>
    %9 = arith.subf %4, %8 : vector<64x128xf32>
    %cst_4 = arith.constant 1.500000e+00 : f32
    %10 = vector.broadcast %cst_4 : f32 to vector<64x128xf32>
    %11 = arith.cmpf olt, %9, %10 : vector<64x128xf32>
    %cst_5 = arith.constant 0.000000e+00 : f32
    %12 = vector.broadcast %cst_5 : f32 to vector<64x128xf32>
    %13 = arith.select %11, %3, %12 : vector<64x128xi1>, vector<64x128xf32>
    %14 = arith.truncf %13 : vector<64x128xf32> to vector<64x128xbf16>
    %c0_6 = arith.constant 0 : index
    %c0_7 = arith.constant 0 : index
    %15 = vector.load %arg3[%c0_6, %c0_7] : memref<8x128xf32, #tpu.memory_space<vmem>>, vector<8x128xf32>
    %16 = arith.truncf %15 : vector<8x128xf32> to vector<8x128xbf16>
    %c0_8 = arith.constant 0 : index
    %c0_9 = arith.constant 0 : index
    %17 = vector.load %arg8[%c0_8, %c0_9] : memref<8x64xf32, #tpu.memory_space<vmem>>, vector<8x64xf32>
    %cst_10 = arith.constant dense<0.000000e+00> : vector<8x64xf32>
    %18 = tpu.matmul %16, %14, %cst_10 {dimension_numbers = #tpu.dot_dimension_numbers<[1], [1], [0], [0], [0, 0, 1, 0], [], []>} : vector<8x128xbf16>, vector<64x128xbf16>, vector<8x64xf32> -> vector<8x64xf32>
    %19 = arith.addf %17, %18 : vector<8x64xf32>
    %c0_11 = arith.constant 0 : index
    %c0_12 = arith.constant 0 : index
    %20 = vector.load %arg8[%c0_11, %c0_12] : memref<8x64xf32, #tpu.memory_space<vmem>>, vector<8x64xf32>
    tpu.vector_store %arg8[%c0_11, %c0_12], %19 {strides = array<i32>} : memref<8x64xf32, #tpu.memory_space<vmem>>, vector<8x64xf32>,
    %c0_i32_13 = arith.constant 0 : i32
    %21 = arith.cmpi eq, %arg2, %c0_i32_13 : i32
    %22 = arith.extui %21 : i1 to i32
    %c0_i32_14 = arith.constant 0 : i32
    %23 = arith.cmpi ne, %22, %c0_i32_14 : i32
    scf.if %23 {
      %c0_15 = arith.constant 0 : index
      %c0_16 = arith.constant 0 : index
      %24 = vector.load %arg8[%c0_15, %c0_16] : memref<8x64xf32, #tpu.memory_space<vmem>>, vector<8x64xf32>
      %c0_17 = arith.constant 0 : index
      %c0_18 = arith.constant 0 : index
      %25 = vector.load %arg6[%c0_17, %c0_18] : memref<1x64xf32, #tpu.memory_space<vmem>>, vector<1x64xf32>
      %26 = vector.broadcast %25 : vector<1x64xf32> to vector<8x64xf32>
      %27 = arith.addf %24, %26 : vector<8x64xf32>
      %c0_19 = arith.constant 0 : index
      %c0_20 = arith.constant 0 : index
      %28 = vector.load %arg7[%c0_19, %c0_20] : memref<8x64xf32, #tpu.memory_space<vmem>>, vector<8x64xf32>
      tpu.vector_store %arg7[%c0_19, %c0_20], %27 {strides = array<i32>} : memref<8x64xf32, #tpu.memory_space<vmem>>, vector<8x64xf32>,
    } else {
    }
    return
  }
  func.func @transform_0(%arg0: i32, %arg1: i32, %arg2: i32) -> (i32, i32) {
    %c0_i32 = arith.constant 0 : i32
    return %arg0, %arg2 : i32, i32
  }
  func.func @transform_1(%arg0: i32, %arg1: i32, %arg2: i32) -> (i32, i32) {
    %c0_i32 = arith.constant 0 : i32
    return %arg1, %arg2 : i32, i32
  }
  func.func @transform_2(%arg0: i32, %arg1: i32, %arg2: i32) -> (i32, i32) {
    %c0_i32 = arith.constant 0 : i32
    return %arg1, %arg2 : i32, i32
  }
  func.func @transform_3(%arg0: i32, %arg1: i32, %arg2: i32) -> (i32, i32) {
    %c0_i32 = arith.constant 0 : i32
    %c0_i32_0 = arith.constant 0 : i32
    return %c0_i32, %arg1 : i32, i32
  }
  func.func @transform_4(%arg0: i32, %arg1: i32, %arg2: i32) -> (i32, i32) {
    %c0_i32 = arith.constant 0 : i32
    return %arg0, %arg1 : i32, i32
  }
}

</mosaic_0001>

<llo_original>
// kernel: linear_svd_forward.1
$region0: #{linear_svd_forward.1}
  #allocation0 [shape = 'u32[]', space=smem, size = 0x4, offset = 0x4, fixed_abs, tag = 'smem constant byte address 0x4 - core index']
  #allocation1 [shape = 'u32[144,128]{1,0:T(1,128)}', space=vmem, size = 0x12000, scoped, tag = 'internal scratch']
  #allocation2 [shape = 'f32[8,64]{1,0:T(8,128)}', space=vmem, size = 0x1000, scoped, tag = 'scratch operand']
  %s0 = inlined_call_operand.hbm [shape: f32[8,128], index: 0, kind: input, shape index: {}]
  %s1 = inlined_call_operand.hbm [shape: f32[64,128], index: 1, kind: input, shape index: {}]
  %s2 = inlined_call_operand.hbm [shape: f32[64,128], index: 2, kind: input, shape index: {}]
  %s3 = inlined_call_operand.vmem [shape: f32[1,64], index: 3, kind: input, shape index: {}]
  %s4 = inlined_call_operand.hbm [shape: f32[8,64], index: 4, kind: output, shape index: {}]
  %s5 = sld [smem:[#allocation0]]
  $region46: #{linear_svd_forward.1} parent=0
    _
  %s7 = ssub.s32 1, %s5
  %s8 = scalar_select 0, %s7, %s5
  $region1: #{linear_svd_forward.1} parent=0
    #allocation3 [shape = 'u8[4096]{0}', space=vmem, size = 0x1000, scoped, tag = 'input window, operand 0, single buffered']
    #allocation4 [shape = 's32[1]{0}', space=sflag, size = 0x4, scoped, tag = 'scoped memory for linear_svd_forward.1']
    #allocation5 [shape = 's32[1]{0}', space=sflag, size = 0x4, scoped, tag = 'scoped memory for linear_svd_forward.1']
    #allocation6 [shape = 'u8[32768]{0}', space=vmem, size = 0x8000, scoped, tag = 'input window, operand 1, single buffered']
    #allocation7 [shape = 's32[1]{0}', space=sflag, size = 0x4, scoped, tag = 'scoped memory for linear_svd_forward.1']
    #allocation8 [shape = 'u8[32768]{0}', space=vmem, size = 0x8000, scoped, tag = 'input window, operand 2, single buffered']
    #allocation9 [shape = 'u8[4096]{0}', space=vmem, size = 0x1000, scoped, tag = 'output window, operand 0, single buffered']
    %9 = vsyncpa [#allocation4], 0
    %10 = vsyncpa [#allocation7], 0
    %11 = vsyncpa [#allocation5], 0
    // Predicated region
    $region2: #{linear_svd_forward.1} parent=1 // pred_check
      _
    $region3: #{linear_svd_forward.1} parent=1 // pred_check_branch
      %13 = sbr.rel (0) target = $region5
    $region4: #{linear_svd_forward.1} parent=1 // pred_region
      %s15 = ssub.s32 128, 128
      %16 = vsyncadd [#allocation4], %s15
      %s18 = sshll.u32 [#allocation3], 4
      %s19 = int_to_ptr.vmem [resolvable:$true] %s18
      %21 = dma.hbm_to_vmem [thread:$0]  %s0, 128, %s19, [#allocation4]
    $region5: #{linear_svd_forward.1} parent=1 // pred_fallthru
      _
    // Predicated region
    $region6: #{linear_svd_forward.1} parent=1 // pred_check
      _
    $region7: #{linear_svd_forward.1} parent=1 // pred_check_branch
      %23 = sbr.rel (0) target = $region9
    $region8: #{linear_svd_forward.1} parent=1 // pred_region
      %s25 = ssub.s32 1024, 1024
      %26 = vsyncadd [#allocation7], %s25
      %s27 = sshll.u32 [#allocation6], 4
      %s28 = int_to_ptr.vmem [resolvable:$true] %s27
      %33 = dma.hbm_to_vmem [thread:$0]  %s1, 1024, %s28, [#allocation7], 128, 128, 8
    $region9: #{linear_svd_forward.1} parent=1 // pred_fallthru
      _
    // Predicated region
    $region10: #{linear_svd_forward.1} parent=1 // pred_check
      _
    $region11: #{linear_svd_forward.1} parent=1 // pred_check_branch
      %35 = sbr.rel (0) target = $region13
    $region12: #{linear_svd_forward.1} parent=1 // pred_region
      %s37 = ssub.s32 1024, 1024
      %38 = vsyncadd [#allocation7], %s37
      %s39 = sshll.u32 [#allocation8], 4
      %s40 = int_to_ptr.vmem [resolvable:$true] %s39
      %45 = dma.hbm_to_vmem [thread:$0]  %s2, 1024, %s40, [#allocation7], 128, 128, 8
    $region13: #{linear_svd_forward.1} parent=1 // pred_fallthru
      _
    // Predicated region
    $region14: #{linear_svd_forward.1} parent=1 // pred_check
      _
    $region15: #{linear_svd_forward.1} parent=1 // pred_check_branch
      %47 = sbr.rel (0) target = $region17
    $region16: #{linear_svd_forward.1} parent=1 // pred_region
      _
    $region17: #{linear_svd_forward.1} parent=1 // pred_fallthru
      _
    // Predicated region
    $region18: #{linear_svd_forward.1} parent=1 // pred_check
      _
    $region19: #{linear_svd_forward.1} parent=1 // pred_check_branch
      %49 = sbr.rel (0) target = $region21
    $region20: #{linear_svd_forward.1} parent=1 // pred_region
      %50 = dma.done [#allocation4], 128
    $region21: #{linear_svd_forward.1} parent=1 // pred_fallthru
      _
    // Predicated region
    $region22: #{linear_svd_forward.1} parent=1 // pred_check
      _
    $region23: #{linear_svd_forward.1} parent=1 // pred_check_branch
      %52 = sbr.rel (0) target = $region25
    $region24: #{linear_svd_forward.1} parent=1 // pred_region
      %53 = dma.done [#allocation7], 1024
    $region25: #{linear_svd_forward.1} parent=1 // pred_fallthru
      _
    // Predicated region
    $region26: #{linear_svd_forward.1} parent=1 // pred_check
      _
    $region27: #{linear_svd_forward.1} parent=1 // pred_check_branch
      %55 = sbr.rel (0) target = $region29
    $region28: #{linear_svd_forward.1} parent=1 // pred_region
      %56 = dma.done [#allocation7], 1024
    $region29: #{linear_svd_forward.1} parent=1 // pred_fallthru
      _
    %p58 = scmp.eq.s32.totalorder 0, 0
    // Predicated region
    $region30: #{linear_svd_forward.1} parent=1 // pred_check
      %p59 = pneg %p58
    $region31: #{linear_svd_forward.1} parent=1 // pred_check_branch
      %61 = sbr.rel (%p59) target = $region33
    $region32: #{linear_svd_forward.1} parent=1 // pred_region
      %vm62 = vcmask 523264
      %63 = vst.msk [vmem:[#allocation2] sm:$0xff] %vm62, 0.0
    $region33: #{linear_svd_forward.1} parent=1 // pred_fallthru
      _
    %v64 = vld [vmem:[#allocation6] sm:$0xff]
    %v65 = vld [vmem:[#allocation6 + $0x8] sm:$0xff]
    %v66 = vld [vmem:[#allocation6 + $0x10] sm:$0xff]
    %v67 = vld [vmem:[#allocation6 + $0x18] sm:$0xff]
    %v68 = vld [vmem:[#allocation6 + $0x20] sm:$0xff]
    %v69 = vld [vmem:[#allocation6 + $0x28] sm:$0xff]
    %v70 = vld [vmem:[#allocation6 + $0x30] sm:$0xff]
    %v71 = vld [vmem:[#allocation6 + $0x38] sm:$0xff]
    %v72 = vld [vmem:[#allocation8] sm:$0xff]
    %v73 = vld [vmem:[#allocation8 + $0x8] sm:$0xff]
    %v74 = vld [vmem:[#allocation8 + $0x10] sm:$0xff]
    %v75 = vld [vmem:[#allocation8 + $0x18] sm:$0xff]
    %v76 = vld [vmem:[#allocation8 + $0x20] sm:$0xff]
    %v77 = vld [vmem:[#allocation8 + $0x28] sm:$0xff]
    %v78 = vld [vmem:[#allocation8 + $0x30] sm:$0xff]
    %v79 = vld [vmem:[#allocation8 + $0x38] sm:$0xff]
    %v80 = vand.u32 2147483647, %v64
    %v81 = vand.u32 2147483647, %v65
    %v82 = vand.u32 2147483647, %v66
    %v83 = vand.u32 2147483647, %v67
    %v84 = vand.u32 2147483647, %v68
    %v85 = vand.u32 2147483647, %v69
    %v86 = vand.u32 2147483647, %v70
    %v87 = vand.u32 2147483647, %v71
    %v88 = vadd.f32 %v80, 1e-16
    %v89 = vadd.f32 %v81, 1e-16
    %v90 = vadd.f32 %v82, 1e-16
    %v91 = vadd.f32 %v83, 1e-16
    %v92 = vadd.f32 %v84, 1e-16
    %v93 = vadd.f32 %v85, 1e-16
    %v94 = vadd.f32 %v86, 1e-16
    %v95 = vadd.f32 %v87, 1e-16
    %v96 = vlog2.pop %v88
    %v97 = vmul.f32 %v96, 0.6931472
    %v98 = vlog2.pop %v89
    %v99 = vmul.f32 %v98, 0.6931472
    %v100 = vlog2.pop %v90
    %v101 = vmul.f32 %v100, 0.6931472
    %v102 = vlog2.pop %v91
    %v103 = vmul.f32 %v102, 0.6931472
    %v104 = vlog2.pop %v92
    %v105 = vmul.f32 %v104, 0.6931472
    %v106 = vlog2.pop %v93
    %v107 = vmul.f32 %v106, 0.6931472
    %v108 = vlog2.pop %v94
    %v109 = vmul.f32 %v108, 0.6931472
    %v110 = vlog2.pop %v95
    %v111 = vmul.f32 %v110, 0.6931472
    %v112 = vsub.f32 %v72, %v97
    %v113 = vsub.f32 %v73, %v99
    %v114 = vsub.f32 %v74, %v101
    %v115 = vsub.f32 %v75, %v103
    %v116 = vsub.f32 %v76, %v105
    %v117 = vsub.f32 %v77, %v107
    %v118 = vsub.f32 %v78, %v109
    %v119 = vsub.f32 %v79, %v111
    %vm120 = vcmp.lt.f32.partialorder %v112, 1.5
    %vm121 = vcmp.lt.f32.partialorder %v113, 1.5
    %vm122 = vcmp.lt.f32.partialorder %v114, 1.5
    %vm123 = vcmp.lt.f32.partialorder %v115, 1.5
    %vm124 = vcmp.lt.f32.partialorder %v116, 1.5
    %vm125 = vcmp.lt.f32.partialorder %v117, 1.5
    %vm126 = vcmp.lt.f32.partialorder %v118, 1.5
    %vm127 = vcmp.lt.f32.partialorder %v119, 1.5
    %v128 = vsel %vm120, %v64, 0.0
    %v129 = vsel %vm121, %v65, 0.0
    %v130 = vsel %vm122, %v66, 0.0
    %v131 = vsel %vm123, %v67, 0.0
    %v132 = vsel %vm124, %v68, 0.0
    %v133 = vsel %vm125, %v69, 0.0
    %v134 = vsel %vm126, %v70, 0.0
    %v135 = vsel %vm127, %v71, 0.0
    %v136 = vpack.c.bf16 %v129, %v128
    %v137 = vpack.c.bf16 %v131, %v130
    %v138 = vpack.c.bf16 %v133, %v132
    %v139 = vpack.c.bf16 %v135, %v134
    %v140 = vld [vmem:[#allocation3] sm:$0xff]
    %v141 = vpack.c.bf16 %v140, %v140
    %v142 = vld [vmem:[#allocation2] sm:$0xff]
    %143 = vmatprep.subr.bf16.mxu0 0
    %144 = vmatpush1.bf16.xpose.msra.mxu0 %v136
    %145 = vmatprep.subr.bf16.mxu0 0
    %146 = vmatpush1.bf16.xpose.msra.mxu0 %v137
    %147 = vmatprep.subr.bf16.mxu0 0
    %148 = vmatpush1.bf16.xpose.msra.mxu0 %v138
    %149 = vmatprep.subr.bf16.mxu0 0
    %150 = vmatpush1.bf16.xpose.msra.mxu0 %v139
    %151 = vmatprep.subr.bf16.mxu0 0
    %152 = vmatpush1.bf16.xpose.msra.mxu0 0
    %153 = vmatprep.subr.bf16.mxu0 0
    %154 = vmatpush1.bf16.xpose.msra.mxu0 0
    %155 = vmatprep.subr.bf16.mxu0 0
    %156 = vmatpush1.bf16.xpose.msra.mxu0 0
    %157 = vmatprep.subr.bf16.mxu0 0
    %158 = vmatpush1.bf16.xpose.msra.mxu0 0
    %159 = vmatprep.subr.bf16.mxu0 0
    %160 = vmatpush1.bf16.xpose.msra.mxu0 0
    %161 = vmatprep.subr.bf16.mxu0 0
    %162 = vmatpush1.bf16.xpose.msra.mxu0 0
    %163 = vmatprep.subr.bf16.mxu0 0
    %164 = vmatpush1.bf16.xpose.msra.mxu0 0
    %165 = vmatprep.subr.bf16.mxu0 0
    %166 = vmatpush1.bf16.xpose.msra.mxu0 0
    %167 = vmatprep.subr.bf16.mxu0 0
    %168 = vmatpush1.bf16.xpose.msra.mxu0 0
    %169 = vmatprep.subr.bf16.mxu0 0
    %170 = vmatpush1.bf16.xpose.msra.mxu0 0
    %171 = vmatprep.subr.bf16.mxu0 0
    %172 = vmatpush1.bf16.xpose.msra.mxu0 0
    %173 = vmatprep.subr.bf16.mxu0 0
    %174 = vmatpush1.bf16.xpose.msra.mxu0 0
    %175 = vmatprep.mubr.bf16.mxu0 0
    %176 = vmatmul.mubr.bf16.gmra.mrb[0].mxu0 %v141
    %v177 = vpop.f32.mrb[0].mxu0
    %v178 = vadd.f32 0.0, %v177
    %v179 = vpop.f32.mrb[0].mxu0
    %v180 = vpop.f32.mrb[0].mxu0
    %v181 = vpop.f32.mrb[0].mxu0
    %182 = vdwg.mxu0
    %v183 = vadd.f32 %v142, %v178
    %vm184 = vcmask 523264
    %185 = vst.msk [vmem:[#allocation2] sm:$0xff] %vm184, %v183
    // Predicated region
    $region34: #{linear_svd_forward.1} parent=1 // pred_check
      %p186 = pneg %p58
    $region35: #{linear_svd_forward.1} parent=1 // pred_check_branch
      %188 = sbr.rel (%p186) target = $region37
    $region36: #{linear_svd_forward.1} parent=1 // pred_region
      %v189 = vld [vmem:[#allocation2] sm:$0xff]
      %v190 = vld [vmem:[%s3] sm:$0x1]
      %v192 = vlaneseq
      %v193 = vshrl.u32 %v192, 7
      %v194 = vsub.s32 0, %v193
      %v195 = vrot.slane %v190, %v194
      %v197 = vadd.f32 %v189, %v195
      %198 = vst.msk [vmem:[#allocation9] sm:$0xff] %vm184, %v197
    $region37: #{linear_svd_forward.1} parent=1 // pred_fallthru
      _
    // Predicated region
    $region38: #{linear_svd_forward.1} parent=1 // pred_check
      _
    $region39: #{linear_svd_forward.1} parent=1 // pred_check_branch
      %200 = sbr.rel (0) target = $region41
    $region40: #{linear_svd_forward.1} parent=1 // pred_region
      %s202 = ssub.s32 128, 128
      %203 = vsyncadd [#allocation5], %s202
      %s205 = sshll.u32 [#allocation9], 4
      %s206 = int_to_ptr.vmem [resolvable:$true] %s205
      %208 = dma.vmem_to_hbm [thread:$0]  %s206, 128, %s4, [#allocation5]
    $region41: #{linear_svd_forward.1} parent=1 // pred_fallthru
      _
    // Predicated region
    $region42: #{linear_svd_forward.1} parent=1 // pred_check
      _
    $region43: #{linear_svd_forward.1} parent=1 // pred_check_branch
      %210 = sbr.rel (0) target = $region45
    $region44: #{linear_svd_forward.1} parent=1 // pred_region
      %211 = dma.done [#allocation5], 128
    $region45: #{linear_svd_forward.1} parent=1 // pred_fallthru
      _
    %212 = vsyncpa [#allocation4], 1
    %213 = vsyncpa [#allocation7], 1
    %214 = vsyncpa [#allocation5], 1

</llo_original>
